<compile_context>
chip_gen: v7x
topology: tpu7x:2x2x1
jax: 0.10.0
libtpu: 0.0.40
codegen_flags: <defaults>
</compile_context>

<pallas_src>
import numpy as np

import jax
import jax.numpy as jnp
from jax.experimental import pallas as pl
from jax.experimental.pallas import tpu as pltpu

BN_EPS = 1e-5
REPAR_EPS = 1e-10
LANE = 128
SUBLANE = 8


def _round_up(n, m):
    return ((n + m - 1) // m) * m


def _softplus(x):
    # numerically stable softplus, pure elementwise (VPU/EUP friendly)
    return jnp.maximum(x, 0.0) + jnp.log1p(jnp.exp(-jnp.abs(x)))


# ---------------- deterministic parameter construction ----------------
def _linear_params(key, fan_in, fan_out):
    # mimic torch.nn.Linear default init: U(-1/sqrt(fan_in), 1/sqrt(fan_in))
    kw, kb = jax.random.split(key)
    bound = 1.0 / np.sqrt(float(fan_in))
    w = jax.random.uniform(kw, (fan_in, fan_out), jnp.float32, -bound, bound)
    b = jax.random.uniform(kb, (fan_out,), jnp.float32, -bound, bound)
    return w, b


def _bn_params(n):
    # torch BatchNorm1d default: weight=1, bias=0
    return jnp.ones((n,), jnp.float32), jnp.zeros((n,), jnp.float32)


def build_params(key, inpd, hidden, latent_dim):
    n_lin = 2 * len(hidden) + 6
    keys = iter(jax.random.split(key, n_lin))
    p = {"enc": [], "dec": []}

    start = inpd
    for h in hidden:
        w, b = _linear_params(next(keys), start, h)
        g, bt = _bn_params(h)
        p["enc"].append({"w": w, "b": b, "g": g, "bt": bt})
        start = h
    w, b = _linear_params(next(keys), start, latent_dim)
    g, bt = _bn_params(latent_dim)
    p["enc_lat"] = {"w": w, "b": b, "g": g, "bt": bt}

    p["wm"], p["bm"] = _linear_params(next(keys), latent_dim, latent_dim)
    p["wsg"], p["bsg"] = _linear_params(next(keys), latent_dim, latent_dim)

    hidden_rev = hidden[::-1]
    p["ws1"], p["bs1"] = _linear_params(next(keys), latent_dim, latent_dim)
    p["ws2"], p["bs2"] = _linear_params(next(keys), latent_dim, hidden_rev[0])

    start = hidden_rev[0]
    for h in hidden_rev:
        w, b = _linear_params(next(keys), start, h)
        g, bt = _bn_params(h)
        p["dec"].append({"w": w, "b": b, "g": g, "bt": bt})
        start = h
    p["wd_out"], p["bd_out"] = _linear_params(next(keys), start, inpd)
    return p


# ---------------- host-side packing for the kernel ----------------
def pack_for_kernel(p, inpd, hidden, latent_dim):
    """Packs ALL weights into one sublane/lane-padded slab and all vectors into one
    lane-padded slab.  Returns (w_slab, w_offsets, vec_slab, vec_rows)."""
    lat_slot = _round_up(latent_dim, LANE)
    mu_off = _round_up(inpd, LANE)

    w_entries = []    # (name, pre-padded weight matrix)
    vec_entries = []  # (name, vector, in-kernel width)

    def add_w(name, w):
        w_entries.append((name, jnp.asarray(w, jnp.float32)))

    def add_v(name, v, width=None):
        v = jnp.asarray(v, jnp.float32)
        width = int(v.shape[0]) if width is None else int(width)
        if int(v.shape[0]) < width:
            v = jnp.pad(v, (0, width - int(v.shape[0])))
        vec_entries.append((name, v, width))

    # encoder hidden blocks
    for i, blk in enumerate(p["enc"]):
        add_w(f"we{i}", blk["w"])
        add_v(f"be{i}", blk["b"]); add_v(f"g{i}", blk["g"]); add_v(f"bt{i}", blk["bt"])
    # encoder latent block
    blk = p["enc_lat"]
    add_w("we_lat", blk["w"])
    add_v("be_lat", blk["b"]); add_v("g_lat", blk["g"]); add_v("bt_lat", blk["bt"])

    # fused fc_mu | fc_sigma, each in its own 128-lane slot (whole-slot in-kernel slices)
    wms = jnp.zeros((latent_dim, 2 * lat_slot), jnp.float32)
    wms = wms.at[:, :latent_dim].set(p["wm"])
    wms = wms.at[:, lat_slot:lat_slot + latent_dim].set(p["wsg"])
    bms = jnp.zeros((2 * lat_slot,), jnp.float32)
    bms = bms.at[:latent_dim].set(p["bm"])
    bms = bms.at[lat_slot:lat_slot + latent_dim].set(p["bsg"])
    add_w("wms", wms); add_v("bms", bms)

    # sampling layers carried at full lane-slot width (zero pad rows/cols keep math identical
    # and keep z/s pad lanes at exactly 0)
    ws1 = jnp.zeros((lat_slot, lat_slot), jnp.float32)
    ws1 = ws1.at[:latent_dim, :latent_dim].set(p["ws1"])
    add_w("ws1", ws1); add_v("bs1", p["bs1"], width=lat_slot)
    ws2 = jnp.zeros((lat_slot, int(p["ws2"].shape[1])), jnp.float32)
    ws2 = ws2.at[:latent_dim, :].set(p["ws2"])
    add_w("ws2", ws2); add_v("bs2", p["bs2"])

    # decoder hidden blocks
    for i, blk in enumerate(p["dec"]):
        add_w(f"wd{i}", blk["w"])
        add_v(f"bd{i}", blk["b"]); add_v(f"gd{i}", blk["g"]); add_v(f"btd{i}", blk["bt"])

    # decoder output linear padded to a full recon lane slot (zero pad cols / bias pad)
    wd_out = jnp.zeros((int(p["wd_out"].shape[0]), mu_off), jnp.float32)
    wd_out = wd_out.at[:, :inpd].set(p["wd_out"])
    add_w("wd_out", wd_out); add_v("bd_out", p["bd_out"], width=mu_off)

    # ---- one lane-padded weight slab (single DMA) ----
    slab_w = _round_up(max(int(w.shape[1]) for _, w in w_entries), LANE)
    w_offsets, blocks, row = {}, [], 0
    for name, w in w_entries:
        fi, fo = int(w.shape[0]), int(w.shape[1])
        w_offsets[name] = (row, fi, fo)
        fi_pad = _round_up(fi, SUBLANE)
        b = jnp.zeros((fi_pad, slab_w), jnp.float32).at[:fi, :fo].set(w)
        blocks.append(b)
        row += fi_pad
    w_slab = jnp.concatenate(blocks, axis=0)

    # ---- one lane-padded vector slab (single DMA) ----
    vec_w = _round_up(max(width for _, _, width in vec_entries), LANE)
    vec_rows, vrows = {}, []
    for r, (name, v, width) in enumerate(vec_entries):
        vec_rows[name] = (r, width)
        vrows.append(jnp.pad(v, (0, vec_w - int(v.shape[0]))))
    vec_slab = jnp.stack(vrows, axis=0)

    return w_slab, w_offsets, vec_slab, vec_rows


def _cost_estimate(B, inpd, hidden, latent_dim, bytes_accessed):
    dims = []
    start = inpd
    for h in hidden:
        dims.append((start, h)); start = h
    dims.append((start, latent_dim))
    dims.append((latent_dim, 2 * latent_dim))          # fused mu|sigma
    hidden_rev = list(hidden[::-1])
    dims.append((latent_dim, latent_dim))
    dims.append((latent_dim, hidden_rev[0]))
    start = hidden_rev[0]
    for h in hidden_rev:
        dims.append((start, h)); start = h
    dims.append((start, inpd))
    flops = int(sum(2 * B * fi * fo for fi, fo in dims))
    # softplus exp/log1p + BN rsqrt + reparam sqrt, roughly
    transcendentals = int(B * latent_dim * 3 + (2 * len(hidden) + 1) * max(hidden))
    return pl.CostEstimate(flops=flops, transcendentals=transcendentals,
                           bytes_accessed=int(bytes_accessed))


# ---------------- Pallas kernel + wrapper ----------------
def autoencoder_forward(x, eps, w_slab, w_offsets, vec_slab, vec_rows, hidden, latent_dim):
    B, inpd = x.shape
    lat_slot = _round_up(latent_dim, LANE)
    mu_off = _round_up(inpd, LANE)        # recon slot: [0, mu_off)
    out_w = mu_off + 2 * lat_slot         # mu slot: [mu_off, +lat_slot); var slot next
    n_hidden = len(hidden)

    # latent-path noise carried at full lane-slot width (pad lanes = 0 keeps z pad lanes 0)
    eps_pad = jnp.zeros((B, lat_slot), jnp.float32).at[:, :latent_dim].set(
        eps.astype(jnp.float32))

    def kernel(x_ref, eps_ref, vecs_ref, w_ref, out_ref):
        def vec(name):
            r, n = vec_rows[name]
            return vecs_ref[r:r + 1, 0:n]                        # (1, n) static view

        def wmat(name):
            r, fi, fo = w_offsets[name]
            return w_ref[r:r + fi, 0:fo]                         # static view of slab

        def linear(a, wname, bname):
            return jnp.dot(a, wmat(wname), preferred_element_type=jnp.float32) + vec(bname)

        inv_b = 1.0 / float(B)

        def bn(h, gname, btname):
            # centered two-pass batch stats (matches reference; no cancellation risk),
            # gamma folded into the scale.
            mean = jnp.sum(h, axis=0, keepdims=True) * inv_b
            c = h - mean
            var = jnp.sum(c * c, axis=0, keepdims=True) * inv_b
            return c * (vec(gname) * jax.lax.rsqrt(var + BN_EPS)) + vec(btname)

        # ---------------- encode ----------------
        h = x_ref[...]
        for i in range(n_hidden):
            h = jnp.maximum(bn(linear(h, f"we{i}", f"be{i}"), f"g{i}", f"bt{i}"), 0.0)
        enc = bn(linear(h, "we_lat", "be_lat"), "g_lat", "bt_lat")   # no ReLU on latent BN

        # fused fc_mu | fc_sigma (single matmul; whole-slot, tile-aligned slices)
        mv = linear(enc, "wms", "bms")                 # (B, 2*lat_slot)
        mu = mv[:, 0:lat_slot]                         # pad lanes exactly 0
        var = _softplus(mv[:, lat_slot:2 * lat_slot])  # pad lanes = log(2), sliced off on host

        # ---------------- reparameterize (training branch) ----------------
        z = mu + eps_ref[...] * jnp.sqrt(var + REPAR_EPS)   # pad lanes stay 0

        # ---------------- decode ----------------
        s = jnp.maximum(linear(z, "ws1", "bs1"), 0.0)       # (B, lat_slot), pad lanes 0
        s = jnp.maximum(linear(s, "ws2", "bs2"), 0.0)       # (B, hidden_rev[0])
        d = s
        for i in range(n_hidden):
            d = jnp.maximum(bn(linear(d, f"wd{i}", f"bd{i}"), f"gd{i}", f"btd{i}"), 0.0)
        recon = linear(d, "wd_out", "bd_out")                # already (B, mu_off) lane slot

        # ---------------- single lane-dense unmasked store ----------------
        out_ref[...] = jnp.concatenate([recon, mu, var], axis=1)

    args = [x.astype(jnp.float32), eps_pad, vec_slab, w_slab]
    bytes_accessed = sum(int(a.size) * 4 for a in args) + B * out_w * 4
    vmem = pltpu.MemorySpace.VMEM
    out = pl.pallas_call(
        kernel,
        out_shape=jax.ShapeDtypeStruct((B, out_w), jnp.float32),
        in_specs=[pl.BlockSpec(memory_space=vmem) for _ in args],
        out_specs=pl.BlockSpec(memory_space=vmem),
        compiler_params=pltpu.CompilerParams(vmem_limit_bytes=32 * 1024 * 1024),
        cost_estimate=_cost_estimate(B, inpd, hidden, latent_dim, bytes_accessed),
    )(*args)

    recon = out[:, 0:inpd]
    mu = out[:, mu_off:mu_off + latent_dim]
    var = out[:, mu_off + lat_slot:mu_off + lat_slot + latent_dim]
    return recon, mu, var


# ---------------- pure-JAX reference (for verification) ----------------
def reference_forward(x, eps, p, hidden):
    def bn(h, g, bt):
        m = jnp.mean(h, axis=0, keepdims=True)
        v = jnp.mean((h - m) ** 2, axis=0, keepdims=True)
        return (h - m) / jnp.sqrt(v + BN_EPS) * g + bt

    h = x
    for blk in p["enc"]:
        h = jax.nn.relu(bn(h @ blk["w"] + blk["b"], blk["g"], blk["bt"]))
    blk = p["enc_lat"]
    enc = bn(h @ blk["w"] + blk["b"], blk["g"], blk["bt"])

    mu = enc @ p["wm"] + p["bm"]
    var = jax.nn.softplus(enc @ p["wsg"] + p["bsg"])
    z = mu + eps * jnp.sqrt(var + REPAR_EPS)

    s = jax.nn.relu(z @ p["ws1"] + p["bs1"])
    s = jax.nn.relu(s @ p["ws2"] + p["bs2"])

    d = s
    for blk in p["dec"]:
        d = jax.nn.relu(bn(d @ blk["w"] + blk["b"], blk["g"], blk["bt"]))
    recon = d @ p["wd_out"] + p["bd_out"]
    return recon, mu, var


if __name__ == "__main__":
    # Small shapes consistent with the module: (batch, inpd) dense features.
    B, INPD, HIDDEN, LATENT = 8, 32, (32, 16), 3

    root = jax.random.PRNGKey(0)
    k_x, k_eps, k_p = jax.random.split(root, 3)

    x = jax.random.normal(k_x, (B, INPD), jnp.float32)
    eps = jax.random.normal(k_eps, (B, LATENT), jnp.float32)  # reparameterization noise
    params = build_params(k_p, INPD, HIDDEN, LATENT)
    w_slab, w_offsets, vec_slab, vec_rows = pack_for_kernel(params, INPD, HIDDEN, LATENT)

    recon, mu, var = autoencoder_forward(x, eps, w_slab, w_offsets, vec_slab, vec_rows,
                                         HIDDEN, LATENT)
    jax.block_until_ready((recon, mu, var))

    r_ref, mu_ref, var_ref = reference_forward(x, eps, params, HIDDEN)
    assert recon.shape == (B, INPD) and mu.shape == (B, LATENT) and var.shape == (B, LATENT)
    assert jnp.allclose(recon, r_ref, atol=1e-4, rtol=1e-4)
    assert jnp.allclose(mu, mu_ref, atol=1e-4, rtol=1e-4)
    assert jnp.allclose(var, var_ref, atol=1e-4, rtol=1e-4)

    print("KERNEL_OK")
</pallas_src>

<mosaic_0001>
module attributes {stable_mosaic.version = 11 : i64} {
  func.func @kernel(%arg0: memref<8x32xf32, #tpu.memory_space<vmem>>, %arg1: memref<8x128xf32, #tpu.memory_space<vmem>>, %arg2: memref<19x256xf32, #tpu.memory_space<vmem>>, %arg3: memref<408x256xf32, #tpu.memory_space<vmem>>, %arg4: memref<8x384xf32, #tpu.memory_space<vmem>>) attributes {dimension_semantics = [], scalar_prefetch = 0 : i64, scratch_operands = 0 : i64, tpu.core_type = #tpu.core_type<tc>} {
    %c0 = arith.constant 0 : index
    %c0_0 = arith.constant 0 : index
    %0 = vector.load %arg0[%c0, %c0_0] : memref<8x32xf32, #tpu.memory_space<vmem>>, vector<8x32xf32>
    %c0_1 = arith.constant 0 : index
    %c0_2 = arith.constant 0 : index
    %1 = vector.load %arg3[%c0_1, %c0_2] : memref<408x256xf32, #tpu.memory_space<vmem>>, vector<32x32xf32>
    %cst = arith.constant dense<0.000000e+00> : vector<8x32xf32>
    %2 = tpu.matmul %0, %1, %cst {dimension_numbers = #tpu.dot_dimension_numbers<[1], [0], [0], [1], [0, 0, 1, 1], [], []>} : vector<8x32xf32>, vector<32x32xf32>, vector<8x32xf32> -> vector<8x32xf32>
    %c0_3 = arith.constant 0 : index
    %c0_4 = arith.constant 0 : index
    %3 = vector.load %arg2[%c0_3, %c0_4] : memref<19x256xf32, #tpu.memory_space<vmem>>, vector<1x32xf32>
    %4 = vector.broadcast %3 : vector<1x32xf32> to vector<8x32xf32>
    %5 = arith.addf %2, %4 : vector<8x32xf32>
    %cst_5 = arith.constant dense<0.000000e+00> : vector<32xf32>
    %6 = vector.multi_reduction <add>, %5, %cst_5 [0] : vector<8x32xf32> to vector<32xf32>
    %7 = vector.shape_cast %6 : vector<32xf32> to vector<1x32xf32>
    %cst_6 = arith.constant 1.250000e-01 : f32
    %8 = vector.broadcast %cst_6 : f32 to vector<1x32xf32>
    %9 = arith.mulf %7, %8 : vector<1x32xf32>
    %10 = vector.broadcast %9 : vector<1x32xf32> to vector<8x32xf32>
    %11 = arith.subf %5, %10 : vector<8x32xf32>
    %12 = arith.mulf %11, %11 : vector<8x32xf32>
    %cst_7 = arith.constant dense<0.000000e+00> : vector<32xf32>
    %13 = vector.multi_reduction <add>, %12, %cst_7 [0] : vector<8x32xf32> to vector<32xf32>
    %14 = vector.shape_cast %13 : vector<32xf32> to vector<1x32xf32>
    %cst_8 = arith.constant 1.250000e-01 : f32
    %15 = vector.broadcast %cst_8 : f32 to vector<1x32xf32>
    %16 = arith.mulf %14, %15 : vector<1x32xf32>
    %c1 = arith.constant 1 : index
    %c0_9 = arith.constant 0 : index
    %17 = vector.load %arg2[%c1, %c0_9] : memref<19x256xf32, #tpu.memory_space<vmem>>, vector<1x32xf32>
    %cst_10 = arith.constant 9.99999974E-6 : f32
    %18 = vector.broadcast %cst_10 : f32 to vector<1x32xf32>
    %19 = arith.addf %16, %18 : vector<1x32xf32>
    %20 = math.rsqrt %19 : vector<1x32xf32>
    %21 = arith.mulf %17, %20 : vector<1x32xf32>
    %22 = vector.broadcast %21 : vector<1x32xf32> to vector<8x32xf32>
    %23 = arith.mulf %11, %22 : vector<8x32xf32>
    %c2 = arith.constant 2 : index
    %c0_11 = arith.constant 0 : index
    %24 = vector.load %arg2[%c2, %c0_11] : memref<19x256xf32, #tpu.memory_space<vmem>>, vector<1x32xf32>
    %25 = vector.broadcast %24 : vector<1x32xf32> to vector<8x32xf32>
    %26 = arith.addf %23, %25 : vector<8x32xf32>
    %cst_12 = arith.constant 0.000000e+00 : f32
    %27 = vector.broadcast %cst_12 : f32 to vector<8x32xf32>
    %28 = arith.maximumf %26, %27 : vector<8x32xf32>
    %c32 = arith.constant 32 : index
    %c0_13 = arith.constant 0 : index
    %29 = vector.load %arg3[%c32, %c0_13] : memref<408x256xf32, #tpu.memory_space<vmem>>, vector<32x16xf32>
    %cst_14 = arith.constant dense<0.000000e+00> : vector<8x16xf32>
    %30 = tpu.matmul %28, %29, %cst_14 {dimension_numbers = #tpu.dot_dimension_numbers<[1], [0], [0], [1], [0, 0, 1, 1], [], []>} : vector<8x32xf32>, vector<32x16xf32>, vector<8x16xf32> -> vector<8x16xf32>
    %c3 = arith.constant 3 : index
    %c0_15 = arith.constant 0 : index
    %31 = vector.load %arg2[%c3, %c0_15] : memref<19x256xf32, #tpu.memory_space<vmem>>, vector<1x16xf32>
    %32 = vector.broadcast %31 : vector<1x16xf32> to vector<8x16xf32>
    %33 = arith.addf %30, %32 : vector<8x16xf32>
    %cst_16 = arith.constant dense<0.000000e+00> : vector<16xf32>
    %34 = vector.multi_reduction <add>, %33, %cst_16 [0] : vector<8x16xf32> to vector<16xf32>
    %35 = vector.shape_cast %34 : vector<16xf32> to vector<1x16xf32>
    %cst_17 = arith.constant 1.250000e-01 : f32
    %36 = vector.broadcast %cst_17 : f32 to vector<1x16xf32>
    %37 = arith.mulf %35, %36 : vector<1x16xf32>
    %38 = vector.broadcast %37 : vector<1x16xf32> to vector<8x16xf32>
    %39 = arith.subf %33, %38 : vector<8x16xf32>
    %40 = arith.mulf %39, %39 : vector<8x16xf32>
    %cst_18 = arith.constant dense<0.000000e+00> : vector<16xf32>
    %41 = vector.multi_reduction <add>, %40, %cst_18 [0] : vector<8x16xf32> to vector<16xf32>
    %42 = vector.shape_cast %41 : vector<16xf32> to vector<1x16xf32>
    %cst_19 = arith.constant 1.250000e-01 : f32
    %43 = vector.broadcast %cst_19 : f32 to vector<1x16xf32>
    %44 = arith.mulf %42, %43 : vector<1x16xf32>
    %c4 = arith.constant 4 : index
    %c0_20 = arith.constant 0 : index
    %45 = vector.load %arg2[%c4, %c0_20] : memref<19x256xf32, #tpu.memory_space<vmem>>, vector<1x16xf32>
    %cst_21 = arith.constant 9.99999974E-6 : f32
    %46 = vector.broadcast %cst_21 : f32 to vector<1x16xf32>
    %47 = arith.addf %44, %46 : vector<1x16xf32>
    %48 = math.rsqrt %47 : vector<1x16xf32>
    %49 = arith.mulf %45, %48 : vector<1x16xf32>
    %50 = vector.broadcast %49 : vector<1x16xf32> to vector<8x16xf32>
    %51 = arith.mulf %39, %50 : vector<8x16xf32>
    %c5 = arith.constant 5 : index
    %c0_22 = arith.constant 0 : index
    %52 = vector.load %arg2[%c5, %c0_22] : memref<19x256xf32, #tpu.memory_space<vmem>>, vector<1x16xf32>
    %53 = vector.broadcast %52 : vector<1x16xf32> to vector<8x16xf32>
    %54 = arith.addf %51, %53 : vector<8x16xf32>
    %cst_23 = arith.constant 0.000000e+00 : f32
    %55 = vector.broadcast %cst_23 : f32 to vector<8x16xf32>
    %56 = arith.maximumf %54, %55 : vector<8x16xf32>
    %c64 = arith.constant 64 : index
    %c0_24 = arith.constant 0 : index
    %57 = vector.load %arg3[%c64, %c0_24] : memref<408x256xf32, #tpu.memory_space<vmem>>, vector<16x3xf32>
    %cst_25 = arith.constant dense<0.000000e+00> : vector<8x3xf32>
    %58 = tpu.matmul %56, %57, %cst_25 {dimension_numbers = #tpu.dot_dimension_numbers<[1], [0], [0], [1], [0, 0, 1, 1], [], []>} : vector<8x16xf32>, vector<16x3xf32>, vector<8x3xf32> -> vector<8x3xf32>
    %c6 = arith.constant 6 : index
    %c0_26 = arith.constant 0 : index
    %59 = vector.load %arg2[%c6, %c0_26] : memref<19x256xf32, #tpu.memory_space<vmem>>, vector<1x3xf32>
    %60 = vector.broadcast %59 : vector<1x3xf32> to vector<8x3xf32>
    %61 = arith.addf %58, %60 : vector<8x3xf32>
    %cst_27 = arith.constant dense<0.000000e+00> : vector<3xf32>
    %62 = vector.multi_reduction <add>, %61, %cst_27 [0] : vector<8x3xf32> to vector<3xf32>
    %63 = vector.shape_cast %62 : vector<3xf32> to vector<1x3xf32>
    %cst_28 = arith.constant 1.250000e-01 : f32
    %64 = vector.broadcast %cst_28 : f32 to vector<1x3xf32>
    %65 = arith.mulf %63, %64 : vector<1x3xf32>
    %66 = vector.broadcast %65 : vector<1x3xf32> to vector<8x3xf32>
    %67 = arith.subf %61, %66 : vector<8x3xf32>
    %68 = arith.mulf %67, %67 : vector<8x3xf32>
    %cst_29 = arith.constant dense<0.000000e+00> : vector<3xf32>
    %69 = vector.multi_reduction <add>, %68, %cst_29 [0] : vector<8x3xf32> to vector<3xf32>
    %70 = vector.shape_cast %69 : vector<3xf32> to vector<1x3xf32>
    %cst_30 = arith.constant 1.250000e-01 : f32
    %71 = vector.broadcast %cst_30 : f32 to vector<1x3xf32>
    %72 = arith.mulf %70, %71 : vector<1x3xf32>
    %c7 = arith.constant 7 : index
    %c0_31 = arith.constant 0 : index
    %73 = vector.load %arg2[%c7, %c0_31] : memref<19x256xf32, #tpu.memory_space<vmem>>, vector<1x3xf32>
    %cst_32 = arith.constant 9.99999974E-6 : f32
    %74 = vector.broadcast %cst_32 : f32 to vector<1x3xf32>
    %75 = arith.addf %72, %74 : vector<1x3xf32>
    %76 = math.rsqrt %75 : vector<1x3xf32>
    %77 = arith.mulf %73, %76 : vector<1x3xf32>
    %78 = vector.broadcast %77 : vector<1x3xf32> to vector<8x3xf32>
    %79 = arith.mulf %67, %78 : vector<8x3xf32>
    %c8 = arith.constant 8 : index
    %c0_33 = arith.constant 0 : index
    %80 = vector.load %arg2[%c8, %c0_33] : memref<19x256xf32, #tpu.memory_space<vmem>>, vector<1x3xf32>
    %81 = vector.broadcast %80 : vector<1x3xf32> to vector<8x3xf32>
    %82 = arith.addf %79, %81 : vector<8x3xf32>
    %c80 = arith.constant 80 : index
    %c0_34 = arith.constant 0 : index
    %83 = vector.load %arg3[%c80, %c0_34] : memref<408x256xf32, #tpu.memory_space<vmem>>, vector<3x256xf32>
    %cst_35 = arith.constant dense<0.000000e+00> : vector<8x256xf32>
    %84 = tpu.matmul %82, %83, %cst_35 {dimension_numbers = #tpu.dot_dimension_numbers<[1], [0], [0], [1], [0, 0, 1, 1], [], []>} : vector<8x3xf32>, vector<3x256xf32>, vector<8x256xf32> -> vector<8x256xf32>
    %c9 = arith.constant 9 : index
    %c0_36 = arith.constant 0 : index
    %85 = vector.load %arg2[%c9, %c0_36] : memref<19x256xf32, #tpu.memory_space<vmem>>, vector<1x256xf32>
    %86 = vector.broadcast %85 : vector<1x256xf32> to vector<8x256xf32>
    %87 = arith.addf %84, %86 : vector<8x256xf32>
    %88 = vector.extract_strided_slice %87 {offsets = [0, 0], sizes = [8, 128], strides = [1, 1]} : vector<8x256xf32> to vector<8x128xf32>
    %89 = vector.extract_strided_slice %87 {offsets = [0, 128], sizes = [8, 128], strides = [1, 1]} : vector<8x256xf32> to vector<8x128xf32>
    %cst_37 = arith.constant 0.000000e+00 : f32
    %90 = vector.broadcast %cst_37 : f32 to vector<8x128xf32>
    %91 = arith.maximumf %89, %90 : vector<8x128xf32>
    %92 = math.absf %89 : vector<8x128xf32>
    %cst_38 = arith.constant 0.000000e+00 : f32
    %93 = vector.broadcast %cst_38 : f32 to vector<8x128xf32>
    %94 = arith.subf %93, %92 : vector<8x128xf32>
    %95 = math.exp %94 : vector<8x128xf32>
    %96 = math.log1p %95 : vector<8x128xf32>
    %97 = arith.addf %91, %96 : vector<8x128xf32>
    %c0_39 = arith.constant 0 : index
    %c0_40 = arith.constant 0 : index
    %98 = vector.load %arg1[%c0_39, %c0_40] : memref<8x128xf32, #tpu.memory_space<vmem>>, vector<8x128xf32>
    %cst_41 = arith.constant 1.000000e-10 : f32
    %99 = vector.broadcast %cst_41 : f32 to vector<8x128xf32>
    %100 = arith.addf %97, %99 : vector<8x128xf32>
    %101 = math.sqrt %100 : vector<8x128xf32>
    %102 = arith.mulf %98, %101 : vector<8x128xf32>
    %103 = arith.addf %88, %102 : vector<8x128xf32>
    %c88 = arith.constant 88 : index
    %c0_42 = arith.constant 0 : index
    %104 = vector.load %arg3[%c88, %c0_42] : memref<408x256xf32, #tpu.memory_space<vmem>>, vector<128x128xf32>
    %cst_43 = arith.constant dense<0.000000e+00> : vector<8x128xf32>
    %105 = tpu.matmul %103, %104, %cst_43 {dimension_numbers = #tpu.dot_dimension_numbers<[1], [0], [0], [1], [0, 0, 1, 1], [], []>} : vector<8x128xf32>, vector<128x128xf32>, vector<8x128xf32> -> vector<8x128xf32>
    %c10 = arith.constant 10 : index
    %c0_44 = arith.constant 0 : index
    %106 = vector.load %arg2[%c10, %c0_44] : memref<19x256xf32, #tpu.memory_space<vmem>>, vector<1x128xf32>
    %107 = vector.broadcast %106 : vector<1x128xf32> to vector<8x128xf32>
    %108 = arith.addf %105, %107 : vector<8x128xf32>
    %cst_45 = arith.constant 0.000000e+00 : f32
    %109 = vector.broadcast %cst_45 : f32 to vector<8x128xf32>
    %110 = arith.maximumf %108, %109 : vector<8x128xf32>
    %c216 = arith.constant 216 : index
    %c0_46 = arith.constant 0 : index
    %111 = vector.load %arg3[%c216, %c0_46] : memref<408x256xf32, #tpu.memory_space<vmem>>, vector<128x16xf32>
    %cst_47 = arith.constant dense<0.000000e+00> : vector<8x16xf32>
    %112 = tpu.matmul %110, %111, %cst_47 {dimension_numbers = #tpu.dot_dimension_numbers<[1], [0], [0], [1], [0, 0, 1, 1], [], []>} : vector<8x128xf32>, vector<128x16xf32>, vector<8x16xf32> -> vector<8x16xf32>
    %c11 = arith.constant 11 : index
    %c0_48 = arith.constant 0 : index
    %113 = vector.load %arg2[%c11, %c0_48] : memref<19x256xf32, #tpu.memory_space<vmem>>, vector<1x16xf32>
    %114 = vector.broadcast %113 : vector<1x16xf32> to vector<8x16xf32>
    %115 = arith.addf %112, %114 : vector<8x16xf32>
    %cst_49 = arith.constant 0.000000e+00 : f32
    %116 = vector.broadcast %cst_49 : f32 to vector<8x16xf32>
    %117 = arith.maximumf %115, %116 : vector<8x16xf32>
    %c344 = arith.constant 344 : index
    %c0_50 = arith.constant 0 : index
    %118 = vector.load %arg3[%c344, %c0_50] : memref<408x256xf32, #tpu.memory_space<vmem>>, vector<16x16xf32>
    %cst_51 = arith.constant dense<0.000000e+00> : vector<8x16xf32>
    %119 = tpu.matmul %117, %118, %cst_51 {dimension_numbers = #tpu.dot_dimension_numbers<[1], [0], [0], [1], [0, 0, 1, 1], [], []>} : vector<8x16xf32>, vector<16x16xf32>, vector<8x16xf32> -> vector<8x16xf32>
    %c12 = arith.constant 12 : index
    %c0_52 = arith.constant 0 : index
    %120 = vector.load %arg2[%c12, %c0_52] : memref<19x256xf32, #tpu.memory_space<vmem>>, vector<1x16xf32>
    %121 = vector.broadcast %120 : vector<1x16xf32> to vector<8x16xf32>
    %122 = arith.addf %119, %121 : vector<8x16xf32>
    %cst_53 = arith.constant dense<0.000000e+00> : vector<16xf32>
    %123 = vector.multi_reduction <add>, %122, %cst_53 [0] : vector<8x16xf32> to vector<16xf32>
    %124 = vector.shape_cast %123 : vector<16xf32> to vector<1x16xf32>
    %cst_54 = arith.constant 1.250000e-01 : f32
    %125 = vector.broadcast %cst_54 : f32 to vector<1x16xf32>
    %126 = arith.mulf %124, %125 : vector<1x16xf32>
    %127 = vector.broadcast %126 : vector<1x16xf32> to vector<8x16xf32>
    %128 = arith.subf %122, %127 : vector<8x16xf32>
    %129 = arith.mulf %128, %128 : vector<8x16xf32>
    %cst_55 = arith.constant dense<0.000000e+00> : vector<16xf32>
    %130 = vector.multi_reduction <add>, %129, %cst_55 [0] : vector<8x16xf32> to vector<16xf32>
    %131 = vector.shape_cast %130 : vector<16xf32> to vector<1x16xf32>
    %cst_56 = arith.constant 1.250000e-01 : f32
    %132 = vector.broadcast %cst_56 : f32 to vector<1x16xf32>
    %133 = arith.mulf %131, %132 : vector<1x16xf32>
    %c13 = arith.constant 13 : index
    %c0_57 = arith.constant 0 : index
    %134 = vector.load %arg2[%c13, %c0_57] : memref<19x256xf32, #tpu.memory_space<vmem>>, vector<1x16xf32>
    %cst_58 = arith.constant 9.99999974E-6 : f32
    %135 = vector.broadcast %cst_58 : f32 to vector<1x16xf32>
    %136 = arith.addf %133, %135 : vector<1x16xf32>
    %137 = math.rsqrt %136 : vector<1x16xf32>
    %138 = arith.mulf %134, %137 : vector<1x16xf32>
    %139 = vector.broadcast %138 : vector<1x16xf32> to vector<8x16xf32>
    %140 = arith.mulf %128, %139 : vector<8x16xf32>
    %c14 = arith.constant 14 : index
    %c0_59 = arith.constant 0 : index
    %141 = vector.load %arg2[%c14, %c0_59] : memref<19x256xf32, #tpu.memory_space<vmem>>, vector<1x16xf32>
    %142 = vector.broadcast %141 : vector<1x16xf32> to vector<8x16xf32>
    %143 = arith.addf %140, %142 : vector<8x16xf32>
    %cst_60 = arith.constant 0.000000e+00 : f32
    %144 = vector.broadcast %cst_60 : f32 to vector<8x16xf32>
    %145 = arith.maximumf %143, %144 : vector<8x16xf32>
    %c360 = arith.constant 360 : index
    %c0_61 = arith.constant 0 : index
    %146 = vector.load %arg3[%c360, %c0_61] : memref<408x256xf32, #tpu.memory_space<vmem>>, vector<16x32xf32>
    %cst_62 = arith.constant dense<0.000000e+00> : vector<8x32xf32>
    %147 = tpu.matmul %145, %146, %cst_62 {dimension_numbers = #tpu.dot_dimension_numbers<[1], [0], [0], [1], [0, 0, 1, 1], [], []>} : vector<8x16xf32>, vector<16x32xf32>, vector<8x32xf32> -> vector<8x32xf32>
    %c15 = arith.constant 15 : index
    %c0_63 = arith.constant 0 : index
    %148 = vector.load %arg2[%c15, %c0_63] : memref<19x256xf32, #tpu.memory_space<vmem>>, vector<1x32xf32>
    %149 = vector.broadcast %148 : vector<1x32xf32> to vector<8x32xf32>
    %150 = arith.addf %147, %149 : vector<8x32xf32>
    %cst_64 = arith.constant dense<0.000000e+00> : vector<32xf32>
    %151 = vector.multi_reduction <add>, %150, %cst_64 [0] : vector<8x32xf32> to vector<32xf32>
    %152 = vector.shape_cast %151 : vector<32xf32> to vector<1x32xf32>
    %cst_65 = arith.constant 1.250000e-01 : f32
    %153 = vector.broadcast %cst_65 : f32 to vector<1x32xf32>
    %154 = arith.mulf %152, %153 : vector<1x32xf32>
    %155 = vector.broadcast %154 : vector<1x32xf32> to vector<8x32xf32>
    %156 = arith.subf %150, %155 : vector<8x32xf32>
    %157 = arith.mulf %156, %156 : vector<8x32xf32>
    %cst_66 = arith.constant dense<0.000000e+00> : vector<32xf32>
    %158 = vector.multi_reduction <add>, %157, %cst_66 [0] : vector<8x32xf32> to vector<32xf32>
    %159 = vector.shape_cast %158 : vector<32xf32> to vector<1x32xf32>
    %cst_67 = arith.constant 1.250000e-01 : f32
    %160 = vector.broadcast %cst_67 : f32 to vector<1x32xf32>
    %161 = arith.mulf %159, %160 : vector<1x32xf32>
    %c16 = arith.constant 16 : index
    %c0_68 = arith.constant 0 : index
    %162 = vector.load %arg2[%c16, %c0_68] : memref<19x256xf32, #tpu.memory_space<vmem>>, vector<1x32xf32>
    %cst_69 = arith.constant 9.99999974E-6 : f32
    %163 = vector.broadcast %cst_69 : f32 to vector<1x32xf32>
    %164 = arith.addf %161, %163 : vector<1x32xf32>
    %165 = math.rsqrt %164 : vector<1x32xf32>
    %166 = arith.mulf %162, %165 : vector<1x32xf32>
    %167 = vector.broadcast %166 : vector<1x32xf32> to vector<8x32xf32>
    %168 = arith.mulf %156, %167 : vector<8x32xf32>
    %c17 = arith.constant 17 : index
    %c0_70 = arith.constant 0 : index
    %169 = vector.load %arg2[%c17, %c0_70] : memref<19x256xf32, #tpu.memory_space<vmem>>, vector<1x32xf32>
    %170 = vector.broadcast %169 : vector<1x32xf32> to vector<8x32xf32>
    %171 = arith.addf %168, %170 : vector<8x32xf32>
    %cst_71 = arith.constant 0.000000e+00 : f32
    %172 = vector.broadcast %cst_71 : f32 to vector<8x32xf32>
    %173 = arith.maximumf %171, %172 : vector<8x32xf32>
    %c376 = arith.constant 376 : index
    %c0_72 = arith.constant 0 : index
    %174 = vector.load %arg3[%c376, %c0_72] : memref<408x256xf32, #tpu.memory_space<vmem>>, vector<32x128xf32>
    %cst_73 = arith.constant dense<0.000000e+00> : vector<8x128xf32>
    %175 = tpu.matmul %173, %174, %cst_73 {dimension_numbers = #tpu.dot_dimension_numbers<[1], [0], [0], [1], [0, 0, 1, 1], [], []>} : vector<8x32xf32>, vector<32x128xf32>, vector<8x128xf32> -> vector<8x128xf32>
    %c18 = arith.constant 18 : index
    %c0_74 = arith.constant 0 : index
    %176 = vector.load %arg2[%c18, %c0_74] : memref<19x256xf32, #tpu.memory_space<vmem>>, vector<1x128xf32>
    %177 = vector.broadcast %176 : vector<1x128xf32> to vector<8x128xf32>
    %178 = arith.addf %175, %177 : vector<8x128xf32>
    %179 = tpu.concatenate %178, %88, %97 in 1 : vector<8x128xf32>, vector<8x128xf32>, vector<8x128xf32> -> vector<8x384xf32>
    %c0_75 = arith.constant 0 : index
    %c0_76 = arith.constant 0 : index
    %180 = vector.load %arg4[%c0_75, %c0_76] : memref<8x384xf32, #tpu.memory_space<vmem>>, vector<8x384xf32>
    tpu.vector_store %arg4[%c0_75, %c0_76], %179 {strides = array<i32>} : memref<8x384xf32, #tpu.memory_space<vmem>>, vector<8x384xf32>,
    return
  }
}

</mosaic_0001>

<llo_original>
// kernel: tpu_custom_call.1
$region0: #{tpu_custom_call.1}
  #allocation0 [shape = 'u32[]', space=smem, size = 0x4, offset = 0x4, fixed_abs, tag = 'smem constant byte address 0x4 - core index']
  #allocation1 [shape = 'u32[144,128]{1,0:T(1,128)}', space=vmem, size = 0x12000, scoped, tag = 'internal scratch']
  %s0 = inlined_call_operand.hbm [shape: f32[8,32], index: 0, kind: input, shape index: {}]
  %s1 = inlined_call_operand.hbm [shape: f32[8,128], index: 1, kind: input, shape index: {}]
  %s2 = inlined_call_operand.hbm [shape: f32[19,256], index: 2, kind: input, shape index: {}]
  %s3 = inlined_call_operand.hbm [shape: f32[408,256], index: 3, kind: input, shape index: {}]
  %s4 = inlined_call_operand.hbm [shape: f32[8,384], index: 4, kind: output, shape index: {}]
  %s5 = sld [smem:[#allocation0]]
  $region42: #{tpu_custom_call.1} parent=0
    _
  %s7 = ssub.s32 1, %s5
  %s8 = scalar_select 0, %s7, %s5
  $region1: #{tpu_custom_call.1} parent=0
    #allocation2 [shape = 'u8[4096]{0}', space=vmem, size = 0x1000, scoped, tag = 'input window, operand 0, single buffered']
    #allocation3 [shape = 's32[1]{0}', space=sflag, size = 0x4, scoped, tag = 'scoped memory for tpu_custom_call.1']
    #allocation4 [shape = 's32[1]{0}', space=sflag, size = 0x4, scoped, tag = 'scoped memory for tpu_custom_call.1']
    #allocation5 [shape = 'u8[4096]{0}', space=vmem, size = 0x1000, scoped, tag = 'input window, operand 1, single buffered']
    #allocation6 [shape = 's32[1]{0}', space=sflag, size = 0x4, scoped, tag = 'scoped memory for tpu_custom_call.1']
    #allocation7 [shape = 'u8[24576]{0}', space=vmem, size = 0x6000, scoped, tag = 'input window, operand 2, single buffered']
    #allocation8 [shape = 'u8[417792]{0}', space=vmem, size = 0x66000, scoped, tag = 'input window, operand 3, single buffered']
    #allocation9 [shape = 's32[1]{0}', space=sflag, size = 0x4, scoped, tag = 'scoped memory for tpu_custom_call.1']
    #allocation10 [shape = 'u8[12288]{0}', space=vmem, size = 0x3000, scoped, tag = 'output window, operand 0, single buffered']
    %9 = vsyncpa [#allocation3], 0
    %10 = vsyncpa [#allocation6], 0
    %11 = vsyncpa [#allocation9], 0
    %12 = vsyncpa [#allocation4], 0
    // Predicated region
    $region2: #{tpu_custom_call.1} parent=1 // pred_check
      _
    $region3: #{tpu_custom_call.1} parent=1 // pred_check_branch
      %14 = sbr.rel (0) target = $region5
    $region4: #{tpu_custom_call.1} parent=1 // pred_region
      %s16 = ssub.s32 128, 128
      %17 = vsyncadd [#allocation3], %s16
      %s19 = sshll.u32 [#allocation2], 4
      %s20 = int_to_ptr.vmem [resolvable:$true] %s19
      %22 = dma.hbm_to_vmem [thread:$0]  %s0, 128, %s20, [#allocation3]
    $region5: #{tpu_custom_call.1} parent=1 // pred_fallthru
      _
    // Predicated region
    $region6: #{tpu_custom_call.1} parent=1 // pred_check
      _
    $region7: #{tpu_custom_call.1} parent=1 // pred_check_branch
      %24 = sbr.rel (0) target = $region9
    $region8: #{tpu_custom_call.1} parent=1 // pred_region
      %s26 = ssub.s32 128, 128
      %27 = vsyncadd [#allocation6], %s26
      %s29 = sshll.u32 [#allocation5], 4
      %s30 = int_to_ptr.vmem [resolvable:$true] %s29
      %32 = dma.hbm_to_vmem [thread:$0]  %s1, 128, %s30, [#allocation6]
    $region9: #{tpu_custom_call.1} parent=1 // pred_fallthru
      _
    // Predicated region
    $region10: #{tpu_custom_call.1} parent=1 // pred_check
      _
    $region11: #{tpu_custom_call.1} parent=1 // pred_check_branch
      %34 = sbr.rel (0) target = $region13
    $region12: #{tpu_custom_call.1} parent=1 // pred_region
      %s36 = ssub.s32 768, 768
      %37 = vsyncadd [#allocation6], %s36
      %s38 = sshll.u32 [#allocation7], 4
      %s39 = int_to_ptr.vmem [resolvable:$true] %s38
      %44 = dma.hbm_to_vmem [thread:$0]  %s2, 768, %s39, [#allocation6], 256, 256, 16
    $region13: #{tpu_custom_call.1} parent=1 // pred_fallthru
      _
    // Predicated region
    $region14: #{tpu_custom_call.1} parent=1 // pred_check
      _
    $region15: #{tpu_custom_call.1} parent=1 // pred_check_branch
      %46 = sbr.rel (0) target = $region17
    $region16: #{tpu_custom_call.1} parent=1 // pred_region
      %s48 = ssub.s32 13056, 13056
      %49 = vsyncadd [#allocation9], %s48
      %s50 = sshll.u32 [#allocation8], 4
      %s51 = int_to_ptr.vmem [resolvable:$true] %s50
      %56 = dma.hbm_to_vmem [thread:$0]  %s3, 13056, %s51, [#allocation9], 256, 256, 16
    $region17: #{tpu_custom_call.1} parent=1 // pred_fallthru
      _
    // Predicated region
    $region18: #{tpu_custom_call.1} parent=1 // pred_check
      _
    $region19: #{tpu_custom_call.1} parent=1 // pred_check_branch
      %58 = sbr.rel (0) target = $region21
    $region20: #{tpu_custom_call.1} parent=1 // pred_region
      %59 = dma.done [#allocation3], 128
    $region21: #{tpu_custom_call.1} parent=1 // pred_fallthru
      _
    // Predicated region
    $region22: #{tpu_custom_call.1} parent=1 // pred_check
      _
    $region23: #{tpu_custom_call.1} parent=1 // pred_check_branch
      %61 = sbr.rel (0) target = $region25
    $region24: #{tpu_custom_call.1} parent=1 // pred_region
      %62 = dma.done [#allocation6], 128
    $region25: #{tpu_custom_call.1} parent=1 // pred_fallthru
      _
    // Predicated region
    $region26: #{tpu_custom_call.1} parent=1 // pred_check
      _
    $region27: #{tpu_custom_call.1} parent=1 // pred_check_branch
      %64 = sbr.rel (0) target = $region29
    $region28: #{tpu_custom_call.1} parent=1 // pred_region
      %65 = dma.done [#allocation6], 768
    $region29: #{tpu_custom_call.1} parent=1 // pred_fallthru
      _
    // Predicated region
    $region30: #{tpu_custom_call.1} parent=1 // pred_check
      _
    $region31: #{tpu_custom_call.1} parent=1 // pred_check_branch
      %67 = sbr.rel (0) target = $region33
    $region32: #{tpu_custom_call.1} parent=1 // pred_region
      %68 = dma.done [#allocation9], 13056
    $region33: #{tpu_custom_call.1} parent=1 // pred_fallthru
      _
    %v69 = vld [vmem:[#allocation2] sm:$0xff]
    %v70 = vld [vmem:[#allocation8] sm:$0xff]
    %v71 = vld [vmem:[#allocation8 + $0x10] sm:$0xff]
    %v72 = vld [vmem:[#allocation8 + $0x20] sm:$0xff]
    %v73 = vld [vmem:[#allocation8 + $0x30] sm:$0xff]
    %v74 = vld [vmem:[#allocation7] ss:$0 sm:$0xff]
    %vm75 = vcmask 261120
    %v77 = vsel %vm75, %v69, 0
    %79 = vmatprep.subr.mxu0 0.0
    %80 = vmatpush1.msra.mxu0 %v70
    %81 = vmatprep.subr.mxu0 0.0
    %82 = vmatpush1.msra.mxu0 %v71
    %83 = vmatprep.subr.mxu0 0.0
    %84 = vmatpush1.msra.mxu0 %v72
    %85 = vmatprep.subr.mxu0 0.0
    %86 = vmatpush1.msra.mxu0 %v73
    %87 = vmatprep.subr.mxu0 0.0
    %88 = vmatpush1.msra.mxu0 0.0
    %89 = vmatprep.subr.mxu0 0.0
    %90 = vmatpush1.msra.mxu0 0.0
    %91 = vmatprep.subr.mxu0 0.0
    %92 = vmatpush1.msra.mxu0 0.0
    %93 = vmatprep.subr.mxu0 0.0
    %94 = vmatpush1.msra.mxu0 0.0
    %95 = vmatprep.subr.mxu0 0.0
    %96 = vmatpush1.msra.mxu0 0.0
    %97 = vmatprep.subr.mxu0 0.0
    %98 = vmatpush1.msra.mxu0 0.0
    %99 = vmatprep.subr.mxu0 0.0
    %100 = vmatpush1.msra.mxu0 0.0
    %101 = vmatprep.subr.mxu0 0.0
    %102 = vmatpush1.msra.mxu0 0.0
    %103 = vmatprep.subr.mxu0 0.0
    %104 = vmatpush1.msra.mxu0 0.0
    %105 = vmatprep.subr.mxu0 0.0
    %106 = vmatpush1.msra.mxu0 0.0
    %107 = vmatprep.subr.mxu0 0.0
    %108 = vmatpush1.msra.mxu0 0.0
    %109 = vmatprep.subr.mxu0 0.0
    %110 = vmatpush1.msra.mxu0 0.0
    %111 = vmatprep.subr.mxu0 0.0
    %112 = vmatpush1.msra.mxu0 0.0
    %113 = vmatprep.subr.mxu0 0.0
    %114 = vmatpush1.msra.mxu0 0.0
    %115 = vmatprep.subr.mxu0 0.0
    %116 = vmatpush1.msra.mxu0 0.0
    %117 = vmatprep.subr.mxu0 0.0
    %118 = vmatpush1.msra.mxu0 0.0
    %119 = vmatprep.subr.mxu0 0.0
    %120 = vmatpush1.msra.mxu0 0.0
    %121 = vmatprep.subr.mxu0 0.0
    %122 = vmatpush1.msra.mxu0 0.0
    %123 = vmatprep.subr.mxu0 0.0
    %124 = vmatpush1.msra.mxu0 0.0
    %125 = vmatprep.subr.mxu0 0.0
    %126 = vmatpush1.msra.mxu0 0.0
    %127 = vmatprep.subr.mxu0 0.0
    %128 = vmatpush1.msra.mxu0 0.0
    %129 = vmatprep.subr.mxu0 0.0
    %130 = vmatpush1.msra.mxu0 0.0
    %131 = vmatprep.subr.mxu0 0.0
    %132 = vmatpush1.msra.mxu0 0.0
    %133 = vmatprep.subr.mxu0 0.0
    %134 = vmatpush1.msra.mxu0 0.0
    %135 = vmatprep.subr.mxu0 0.0
    %136 = vmatpush1.msra.mxu0 0.0
    %137 = vmatprep.subr.mxu0 0.0
    %138 = vmatpush1.msra.mxu0 0.0
    %139 = vmatprep.subr.mxu0 0.0
    %140 = vmatpush1.msra.mxu0 0.0
    %141 = vmatprep.subr.mxu0 0.0
    %142 = vmatpush1.msra.mxu0 0.0
    %143 = vmatprep.mubr.f32.mxu0 0.0
    %144 = vmatmul.mubr.f32.gmra.mrb[0].mxu0 %v77
    %v145 = vpop.f32.mrb[0].mxu0
    %v146 = vadd.f32 %v74, %v145
    %v147 = vpop.f32.mrb[0].mxu0
    %148 = vdwg.mxu0
    %v149 = vsel %vm75, %v146, 0.0
    %v150 = vrot.slane %v149, 4
    %v151 = vadd.f32 %v149, %v150
    %v152 = vrot.slane %v151, 2
    %v153 = vadd.f32 %v151, %v152
    %v154 = vrot.slane %v153, 1
    %v155 = vadd.f32 %v153, %v154
    %v156 = vmul.f32 %v155, 0.125
    %v157 = vsub.f32 %v146, %v156
    %v158 = vmul.f32 %v157, %v157
    %v159 = vsel %vm75, %v158, 0.0
    %v160 = vrot.slane %v159, 4
    %v161 = vadd.f32 %v159, %v160
    %v162 = vrot.slane %v161, 2
    %v163 = vadd.f32 %v161, %v162
    %v164 = vrot.slane %v163, 1
    %v165 = vadd.f32 %v163, %v164
    %v166 = vmul.f32 %v165, 0.125
    %v167 = vld [vmem:[#allocation7 + $0x1] ss:$0 sm:$0xff]
    %v168 = vadd.f32 %v166, 1e-05
    %v169 = vrsqrt.pop %v168
    %v170 = vmul.f32 %v167, %v169
    %v171 = vmul.f32 %v157, %v170
    %v172 = vld [vmem:[#allocation7 + $0x2] ss:$0 sm:$0xff]
    %v173 = vadd.f32 %v171, %v172
    %v174 = vmax.f32 %v173, 0.0
    %v175 = vld [vmem:[#allocation8 + $0x40] sm:$0xff]
    %v176 = vld [vmem:[#allocation8 + $0x50] sm:$0xff]
    %v177 = vld [vmem:[#allocation8 + $0x60] sm:$0xff]
    %v178 = vld [vmem:[#allocation8 + $0x70] sm:$0xff]
    %v179 = vld [vmem:[#allocation7 + $0x3] ss:$0 sm:$0xff]
    %v181 = vsel %vm75, %v174, 0
    %183 = vmatprep.subr.mxu0 0.0
    %184 = vmatpush1.msra.mxu0 %v175
    %185 = vmatprep.subr.mxu0 0.0
    %186 = vmatpush1.msra.mxu0 %v176
    %187 = vmatprep.subr.mxu0 0.0
    %188 = vmatpush1.msra.mxu0 %v177
    %189 = vmatprep.subr.mxu0 0.0
    %190 = vmatpush1.msra.mxu0 %v178
    %191 = vmatprep.subr.mxu0 0.0
    %192 = vmatpush1.msra.mxu0 0.0
    %193 = vmatprep.subr.mxu0 0.0
    %194 = vmatpush1.msra.mxu0 0.0
    %195 = vmatprep.subr.mxu0 0.0
    %196 = vmatpush1.msra.mxu0 0.0
    %197 = vmatprep.subr.mxu0 0.0
    %198 = vmatpush1.msra.mxu0 0.0
    %199 = vmatprep.subr.mxu0 0.0
    %200 = vmatpush1.msra.mxu0 0.0
    %201 = vmatprep.subr.mxu0 0.0
    %202 = vmatpush1.msra.mxu0 0.0
    %203 = vmatprep.subr.mxu0 0.0
    %204 = vmatpush1.msra.mxu0 0.0
    %205 = vmatprep.subr.mxu0 0.0
    %206 = vmatpush1.msra.mxu0 0.0
    %207 = vmatprep.subr.mxu0 0.0
    %208 = vmatpush1.msra.mxu0 0.0
    %209 = vmatprep.subr.mxu0 0.0
    %210 = vmatpush1.msra.mxu0 0.0
    %211 = vmatprep.subr.mxu0 0.0
    %212 = vmatpush1.msra.mxu0 0.0
    %213 = vmatprep.subr.mxu0 0.0
    %214 = vmatpush1.msra.mxu0 0.0
    %215 = vmatprep.subr.mxu0 0.0
    %216 = vmatpush1.msra.mxu0 0.0
    %217 = vmatprep.subr.mxu0 0.0
    %218 = vmatpush1.msra.mxu0 0.0
    %219 = vmatprep.subr.mxu0 0.0
    %220 = vmatpush1.msra.mxu0 0.0
    %221 = vmatprep.subr.mxu0 0.0
    %222 = vmatpush1.msra.mxu0 0.0
    %223 = vmatprep.subr.mxu0 0.0
    %224 = vmatpush1.msra.mxu0 0.0
    %225 = vmatprep.subr.mxu0 0.0
    %226 = vmatpush1.msra.mxu0 0.0
    %227 = vmatprep.subr.mxu0 0.0
    %228 = vmatpush1.msra.mxu0 0.0
    %229 = vmatprep.subr.mxu0 0.0
    %230 = vmatpush1.msra.mxu0 0.0
    %231 = vmatprep.subr.mxu0 0.0
    %232 = vmatpush1.msra.mxu0 0.0
    %233 = vmatprep.subr.mxu0 0.0
    %234 = vmatpush1.msra.mxu0 0.0
    %235 = vmatprep.subr.mxu0 0.0
    %236 = vmatpush1.msra.mxu0 0.0
    %237 = vmatprep.subr.mxu0 0.0
    %238 = vmatpush1.msra.mxu0 0.0
    %239 = vmatprep.subr.mxu0 0.0
    %240 = vmatpush1.msra.mxu0 0.0
    %241 = vmatprep.subr.mxu0 0.0
    %242 = vmatpush1.msra.mxu0 0.0
    %243 = vmatprep.subr.mxu0 0.0
    %244 = vmatpush1.msra.mxu0 0.0
    %245 = vmatprep.subr.mxu0 0.0
    %246 = vmatpush1.msra.mxu0 0.0
    %247 = vmatprep.mubr.f32.mxu0 0.0
    %248 = vmatmul.mubr.f32.gmra.mrb[0].mxu0 %v181
    %v249 = vpop.f32.mrb[0].mxu0
    %v250 = vadd.f32 %v179, %v249
    %v251 = vpop.f32.mrb[0].mxu0
    %252 = vdwg.mxu0
    %vm253 = vcmask 130048
    %v254 = vsel %vm253, %v250, 0.0
    %v255 = vrot.slane %v254, 4
    %v256 = vadd.f32 %v254, %v255
    %v257 = vrot.slane %v256, 2
    %v258 = vadd.f32 %v256, %v257
    %v259 = vrot.slane %v258, 1
    %v260 = vadd.f32 %v258, %v259
    %v261 = vmul.f32 %v260, 0.125
    %v262 = vsub.f32 %v250, %v261
    %v263 = vmul.f32 %v262, %v262
    %v264 = vsel %vm253, %v263, 0.0
    %v265 = vrot.slane %v264, 4
    %v266 = vadd.f32 %v264, %v265
    %v267 = vrot.slane %v266, 2
    %v268 = vadd.f32 %v266, %v267
    %v269 = vrot.slane %v268, 1
    %v270 = vadd.f32 %v268, %v269
    %v271 = vmul.f32 %v270, 0.125
    %v272 = vld [vmem:[#allocation7 + $0x4] ss:$0 sm:$0xff]
    %v273 = vadd.f32 %v271, 1e-05
    %v274 = vrsqrt.pop %v273
    %v275 = vmul.f32 %v272, %v274
    %v276 = vmul.f32 %v262, %v275
    %v277 = vld [vmem:[#allocation7 + $0x5] ss:$0 sm:$0xff]
    %v278 = vadd.f32 %v276, %v277
    %v279 = vmax.f32 %v278, 0.0
    %v280 = vld [vmem:[#allocation8 + $0x80] sm:$0xff]
    %v281 = vld [vmem:[#allocation8 + $0x90] sm:$0xff]
    %v282 = vld [vmem:[#allocation7 + $0x6] ss:$0 sm:$0xff]
    %v284 = vsel %vm253, %v279, 0
    %286 = vmatprep.subr.mxu0 0.0
    %287 = vmatpush1.msra.mxu0 %v280
    %288 = vmatprep.subr.mxu0 0.0
    %289 = vmatpush1.msra.mxu0 %v281
    %290 = vmatprep.subr.mxu0 0.0
    %291 = vmatpush1.msra.mxu0 0.0
    %292 = vmatprep.subr.mxu0 0.0
    %293 = vmatpush1.msra.mxu0 0.0
    %294 = vmatprep.subr.mxu0 0.0
    %295 = vmatpush1.msra.mxu0 0.0
    %296 = vmatprep.subr.mxu0 0.0
    %297 = vmatpush1.msra.mxu0 0.0
    %298 = vmatprep.subr.mxu0 0.0
    %299 = vmatpush1.msra.mxu0 0.0
    %300 = vmatprep.subr.mxu0 0.0
    %301 = vmatpush1.msra.mxu0 0.0
    %302 = vmatprep.subr.mxu0 0.0
    %303 = vmatpush1.msra.mxu0 0.0
    %304 = vmatprep.subr.mxu0 0.0
    %305 = vmatpush1.msra.mxu0 0.0
    %306 = vmatprep.subr.mxu0 0.0
    %307 = vmatpush1.msra.mxu0 0.0
    %308 = vmatprep.subr.mxu0 0.0
    %309 = vmatpush1.msra.mxu0 0.0
    %310 = vmatprep.subr.mxu0 0.0
    %311 = vmatpush1.msra.mxu0 0.0
    %312 = vmatprep.subr.mxu0 0.0
    %313 = vmatpush1.msra.mxu0 0.0
    %314 = vmatprep.subr.mxu0 0.0
    %315 = vmatpush1.msra.mxu0 0.0
    %316 = vmatprep.subr.mxu0 0.0
    %317 = vmatpush1.msra.mxu0 0.0
    %318 = vmatprep.subr.mxu0 0.0
    %319 = vmatpush1.msra.mxu0 0.0
    %320 = vmatprep.subr.mxu0 0.0
    %321 = vmatpush1.msra.mxu0 0.0
    %322 = vmatprep.subr.mxu0 0.0
    %323 = vmatpush1.msra.mxu0 0.0
    %324 = vmatprep.subr.mxu0 0.0
    %325 = vmatpush1.msra.mxu0 0.0
    %326 = vmatprep.subr.mxu0 0.0
    %327 = vmatpush1.msra.mxu0 0.0
    %328 = vmatprep.subr.mxu0 0.0
    %329 = vmatpush1.msra.mxu0 0.0
    %330 = vmatprep.subr.mxu0 0.0
    %331 = vmatpush1.msra.mxu0 0.0
    %332 = vmatprep.subr.mxu0 0.0
    %333 = vmatpush1.msra.mxu0 0.0
    %334 = vmatprep.subr.mxu0 0.0
    %335 = vmatpush1.msra.mxu0 0.0
    %336 = vmatprep.subr.mxu0 0.0
    %337 = vmatpush1.msra.mxu0 0.0
    %338 = vmatprep.subr.mxu0 0.0
    %339 = vmatpush1.msra.mxu0 0.0
    %340 = vmatprep.subr.mxu0 0.0
    %341 = vmatpush1.msra.mxu0 0.0
    %342 = vmatprep.subr.mxu0 0.0
    %343 = vmatpush1.msra.mxu0 0.0
    %344 = vmatprep.subr.mxu0 0.0
    %345 = vmatpush1.msra.mxu0 0.0
    %346 = vmatprep.subr.mxu0 0.0
    %347 = vmatpush1.msra.mxu0 0.0
    %348 = vmatprep.subr.mxu0 0.0
    %349 = vmatpush1.msra.mxu0 0.0
    %350 = vmatprep.mubr.f32.mxu0 0.0
    %351 = vmatmul.mubr.f32.gmra.mrb[0].mxu0 %v284
    %v352 = vpop.f32.mrb[0].mxu0
    %v353 = vadd.f32 %v282, %v352
    %v354 = vpop.f32.mrb[0].mxu0
    %355 = vdwg.mxu0
    %vm356 = vcmask 23552
    %v357 = vsel %vm356, %v353, 0.0
    %v358 = vrot.slane %v357, 4
    %v359 = vadd.f32 %v357, %v358
    %v360 = vrot.slane %v359, 2
    %v361 = vadd.f32 %v359, %v360
    %v362 = vrot.slane %v361, 1
    %v363 = vadd.f32 %v361, %v362
    %v364 = vmul.f32 %v363, 0.125
    %v365 = vsub.f32 %v353, %v364
    %v366 = vmul.f32 %v365, %v365
    %v367 = vsel %vm356, %v366, 0.0
    %v368 = vrot.slane %v367, 4
    %v369 = vadd.f32 %v367, %v368
    %v370 = vrot.slane %v369, 2
    %v371 = vadd.f32 %v369, %v370
    %v372 = vrot.slane %v371, 1
    %v373 = vadd.f32 %v371, %v372
    %v374 = vmul.f32 %v373, 0.125
    %v375 = vld [vmem:[#allocation7 + $0x7] ss:$0 sm:$0xff]
    %v376 = vadd.f32 %v374, 1e-05
    %v377 = vrsqrt.pop %v376
    %v378 = vmul.f32 %v375, %v377
    %v379 = vmul.f32 %v365, %v378
    %v380 = vld [vmem:[#allocation7 + $0x10] ss:$0 sm:$0xff]
    %v381 = vadd.f32 %v379, %v380
    %v382 = vld [vmem:[#allocation8 + $0xa0] sm:$0x7]
    %v383 = vld [vmem:[#allocation8 + $0xa8] sm:$0x7]
    %s384 = scalar_lea.vmem [#allocation7], 17
    %v385 = vld [vmem:[%s384] ss:$8 sm:$0x3]
    %v387 = vlaneseq
    %v388 = vshrl.u32 %v387, 7
    %v389 = vsub.s32 0, %v388
    %v390 = vrot.slane %v385, %v389
    %v391 = vlaneseq
    %v392 = vshrl.u32 %v391, 7
    %v393 = vsub.s32 1, %v392
    %v394 = vrot.slane %v385, %v393
    %v398 = vsel %vm356, %v381, 0
    %vm400 = vcmask 1042432
    %v402 = vsel %vm400, %v382, 0
    %v405 = vsel %vm400, %v383, 0
    %407 = vmatprep.subr.mxu0 %v405
    %408 = vmatpush1.msra.mxu0 %v402
    %409 = vmatprep.subr.mxu0 0.0
    %410 = vmatpush1.msra.mxu0 0.0
    %411 = vmatprep.subr.mxu0 0.0
    %412 = vmatpush1.msra.mxu0 0.0
    %413 = vmatprep.subr.mxu0 0.0
    %414 = vmatpush1.msra.mxu0 0.0
    %415 = vmatprep.subr.mxu0 0.0
    %416 = vmatpush1.msra.mxu0 0.0
    %417 = vmatprep.subr.mxu0 0.0
    %418 = vmatpush1.msra.mxu0 0.0
    %419 = vmatprep.subr.mxu0 0.0
    %420 = vmatpush1.msra.mxu0 0.0
    %421 = vmatprep.subr.mxu0 0.0
    %422 = vmatpush1.msra.mxu0 0.0
    %423 = vmatprep.subr.mxu0 0.0
    %424 = vmatpush1.msra.mxu0 0.0
    %425 = vmatprep.subr.mxu0 0.0
    %426 = vmatpush1.msra.mxu0 0.0
    %427 = vmatprep.subr.mxu0 0.0
    %428 = vmatpush1.msra.mxu0 0.0
    %429 = vmatprep.subr.mxu0 0.0
    %430 = vmatpush1.msra.mxu0 0.0
    %431 = vmatprep.subr.mxu0 0.0
    %432 = vmatpush1.msra.mxu0 0.0
    %433 = vmatprep.subr.mxu0 0.0
    %434 = vmatpush1.msra.mxu0 0.0
    %435 = vmatprep.subr.mxu0 0.0
    %436 = vmatpush1.msra.mxu0 0.0
    %437 = vmatprep.subr.mxu0 0.0
    %438 = vmatpush1.msra.mxu0 0.0
    %439 = vmatprep.subr.mxu0 0.0
    %440 = vmatpush1.msra.mxu0 0.0
    %441 = vmatprep.subr.mxu0 0.0
    %442 = vmatpush1.msra.mxu0 0.0
    %443 = vmatprep.subr.mxu0 0.0
    %444 = vmatpush1.msra.mxu0 0.0
    %445 = vmatprep.subr.mxu0 0.0
    %446 = vmatpush1.msra.mxu0 0.0
    %447 = vmatprep.subr.mxu0 0.0
    %448 = vmatpush1.msra.mxu0 0.0
    %449 = vmatprep.subr.mxu0 0.0
    %450 = vmatpush1.msra.mxu0 0.0
    %451 = vmatprep.subr.mxu0 0.0
    %452 = vmatpush1.msra.mxu0 0.0
    %453 = vmatprep.subr.mxu0 0.0
    %454 = vmatpush1.msra.mxu0 0.0
    %455 = vmatprep.subr.mxu0 0.0
    %456 = vmatpush1.msra.mxu0 0.0
    %457 = vmatprep.subr.mxu0 0.0
    %458 = vmatpush1.msra.mxu0 0.0
    %459 = vmatprep.subr.mxu0 0.0
    %460 = vmatpush1.msra.mxu0 0.0
    %461 = vmatprep.subr.mxu0 0.0
    %462 = vmatpush1.msra.mxu0 0.0
    %463 = vmatprep.subr.mxu0 0.0
    %464 = vmatpush1.msra.mxu0 0.0
    %465 = vmatprep.subr.mxu0 0.0
    %466 = vmatpush1.msra.mxu0 0.0
    %467 = vmatprep.subr.mxu0 0.0
    %468 = vmatpush1.msra.mxu0 0.0
    %469 = vmatprep.subr.mxu0 0.0
    %470 = vmatpush1.msra.mxu0 0.0
    %471 = vmatprep.mubr.f32.mxu0 0.0
    %472 = vmatmul.mubr.f32.gmra.mrb[0].mxu0 %v398
    %v473 = vpop.f32.mrb[0].mxu0
    %v474 = vadd.f32 %v390, %v473
    %v475 = vpop.f32.mrb[0].mxu0
    %v476 = vadd.f32 %v394, %v475
    %477 = vdwg.mxu0
    %v478 = vmax.f32 %v476, 0.0
    %v479 = vand.u32 2147483647, %v476
    %v480 = vsub.f32 0.0, %v479
    %v481 = vmul.f32 %v480, 1.442695
    %v482 = vpow.pop %v481
    %v483 = vadd.f32 %v482, 1.0
    %v484 = vlog2.pop %v483
    %v485 = vmul.f32 %v484, 0.6931472
    %v486 = vmul.f32 -0.5, %v482
    %v487 = vadd.f32 %v486, 1.0
    %v488 = vmul.f32 %v487, %v482
    %v489 = vand.u32 2147483647, %v482
    %vm490 = vcmp.lt.f32.partialorder %v489, 0.0004427343
    %v491 = vsel %vm490, %v488, %v485
    %v492 = vadd.f32 %v478, %v491
    %v493 = vld [vmem:[#allocation5] sm:$0xff]
    %v494 = vadd.f32 %v492, 1e-10
    %v495 = vrsqrt.pop %v494
    %v496 = vmul.f32 %v494, %v495
    %vm497 = vcmp.eq.f32.partialorder %v494, inf
    %v498 = vsel %vm497, %v494, %v496
    %vm499 = vcmp.eq.f32.partialorder %v494, 0.0
    %v500 = vand.u32 %v494, 2147483648
    %v501 = vsel %vm499, %v500, %v498
    %v502 = vmul.f32 %v493, %v501
    %v503 = vadd.f32 %v474, %v502
    %v504 = vld [vmem:[#allocation8 + $0xb0] sm:$0xff]
    %v505 = vld [vmem:[#allocation8 + $0xc0] sm:$0xff]
    %v506 = vld [vmem:[#allocation8 + $0xd0] sm:$0xff]
    %v507 = vld [vmem:[#allocation8 + $0xe0] sm:$0xff]
    %v508 = vld [vmem:[#allocation8 + $0xf0] sm:$0xff]
    %v509 = vld [vmem:[#allocation8 + $0x100] sm:$0xff]
    %v510 = vld [vmem:[#allocation8 + $0x110] sm:$0xff]
    %v511 = vld [vmem:[#allocation8 + $0x120] sm:$0xff]
    %v512 = vld [vmem:[#allocation8 + $0x130] sm:$0xff]
    %v513 = vld [vmem:[#allocation8 + $0x140] sm:$0xff]
    %v514 = vld [vmem:[#allocation8 + $0x150] sm:$0xff]
    %v515 = vld [vmem:[#allocation8 + $0x160] sm:$0xff]
    %v516 = vld [vmem:[#allocation8 + $0x170] sm:$0xff]
    %v517 = vld [vmem:[#allocation8 + $0x180] sm:$0xff]
    %v518 = vld [vmem:[#allocation8 + $0x190] sm:$0xff]
    %v519 = vld [vmem:[#allocation8 + $0x1a0] sm:$0xff]
    %v520 = vld [vmem:[#allocation7 + $0x12] ss:$0 sm:$0xff]
    %521 = vmatprep.subr.mxu0 0.0
    %522 = vmatpush1.msra.mxu0 %v504
    %523 = vmatprep.subr.mxu0 0.0
    %524 = vmatpush1.msra.mxu0 %v505
    %525 = vmatprep.subr.mxu0 0.0
    %526 = vmatpush1.msra.mxu0 %v506
    %527 = vmatprep.subr.mxu0 0.0
    %528 = vmatpush1.msra.mxu0 %v507
    %529 = vmatprep.subr.mxu0 0.0
    %530 = vmatpush1.msra.mxu0 %v508
    %531 = vmatprep.subr.mxu0 0.0
    %532 = vmatpush1.msra.mxu0 %v509
    %533 = vmatprep.subr.mxu0 0.0
    %534 = vmatpush1.msra.mxu0 %v510
    %535 = vmatprep.subr.mxu0 0.0
    %536 = vmatpush1.msra.mxu0 %v511
    %537 = vmatprep.subr.mxu0 0.0
    %538 = vmatpush1.msra.mxu0 %v512
    %539 = vmatprep.subr.mxu0 0.0
    %540 = vmatpush1.msra.mxu0 %v513
    %541 = vmatprep.subr.mxu0 0.0
    %542 = vmatpush1.msra.mxu0 %v514
    %543 = vmatprep.subr.mxu0 0.0
    %544 = vmatpush1.msra.mxu0 %v515
    %545 = vmatprep.subr.mxu0 0.0
    %546 = vmatpush1.msra.mxu0 %v516
    %547 = vmatprep.subr.mxu0 0.0
    %548 = vmatpush1.msra.mxu0 %v517
    %549 = vmatprep.subr.mxu0 0.0
    %550 = vmatpush1.msra.mxu0 %v518
    %551 = vmatprep.subr.mxu0 0.0
    %552 = vmatpush1.msra.mxu0 %v519
    %553 = vmatprep.subr.mxu0 0.0
    %554 = vmatpush1.msra.mxu0 0.0
    %555 = vmatprep.subr.mxu0 0.0
    %556 = vmatpush1.msra.mxu0 0.0
    %557 = vmatprep.subr.mxu0 0.0
    %558 = vmatpush1.msra.mxu0 0.0
    %559 = vmatprep.subr.mxu0 0.0
    %560 = vmatpush1.msra.mxu0 0.0
    %561 = vmatprep.subr.mxu0 0.0
    %562 = vmatpush1.msra.mxu0 0.0
    %563 = vmatprep.subr.mxu0 0.0
    %564 = vmatpush1.msra.mxu0 0.0
    %565 = vmatprep.subr.mxu0 0.0
    %566 = vmatpush1.msra.mxu0 0.0
    %567 = vmatprep.subr.mxu0 0.0
    %568 = vmatpush1.msra.mxu0 0.0
    %569 = vmatprep.subr.mxu0 0.0
    %570 = vmatpush1.msra.mxu0 0.0
    %571 = vmatprep.subr.mxu0 0.0
    %572 = vmatpush1.msra.mxu0 0.0
    %573 = vmatprep.subr.mxu0 0.0
    %574 = vmatpush1.msra.mxu0 0.0
    %575 = vmatprep.subr.mxu0 0.0
    %576 = vmatpush1.msra.mxu0 0.0
    %577 = vmatprep.subr.mxu0 0.0
    %578 = vmatpush1.msra.mxu0 0.0
    %579 = vmatprep.subr.mxu0 0.0
    %580 = vmatpush1.msra.mxu0 0.0
    %581 = vmatprep.subr.mxu0 0.0
    %582 = vmatpush1.msra.mxu0 0.0
    %583 = vmatprep.subr.mxu0 0.0
    %584 = vmatpush1.msra.mxu0 0.0
    %585 = vmatprep.mubr.f32.mxu0 0.0
    %586 = vmatmul.mubr.f32.gmra.mrb[0].mxu0 %v503
    %v587 = vpop.f32.mrb[0].mxu0
    %v588 = vadd.f32 %v520, %v587
    %v589 = vpop.f32.mrb[0].mxu0
    %590 = vdwg.mxu0
    %v591 = vmax.f32 %v588, 0.0
    %v592 = vld [vmem:[#allocation8 + $0x1b0] sm:$0xff]
    %v593 = vld [vmem:[#allocation8 + $0x1c0] sm:$0xff]
    %v594 = vld [vmem:[#allocation8 + $0x1d0] sm:$0xff]
    %v595 = vld [vmem:[#allocation8 + $0x1e0] sm:$0xff]
    %v596 = vld [vmem:[#allocation8 + $0x1f0] sm:$0xff]
    %v597 = vld [vmem:[#allocation8 + $0x200] sm:$0xff]
    %v598 = vld [vmem:[#allocation8 + $0x210] sm:$0xff]
    %v599 = vld [vmem:[#allocation8 + $0x220] sm:$0xff]
    %v600 = vld [vmem:[#allocation8 + $0x230] sm:$0xff]
    %v601 = vld [vmem:[#allocation8 + $0x240] sm:$0xff]
    %v602 = vld [vmem:[#allocation8 + $0x250] sm:$0xff]
    %v603 = vld [vmem:[#allocation8 + $0x260] sm:$0xff]
    %v604 = vld [vmem:[#allocation8 + $0x270] sm:$0xff]
    %v605 = vld [vmem:[#allocation8 + $0x280] sm:$0xff]
    %v606 = vld [vmem:[#allocation8 + $0x290] sm:$0xff]
    %v607 = vld [vmem:[#allocation8 + $0x2a0] sm:$0xff]
    %v608 = vld [vmem:[#allocation7 + $0x13] ss:$0 sm:$0xff]
    %609 = vmatprep.subr.mxu0 0.0
    %610 = vmatpush1.msra.mxu0 %v592
    %611 = vmatprep.subr.mxu0 0.0
    %612 = vmatpush1.msra.mxu0 %v593
    %613 = vmatprep.subr.mxu0 0.0
    %614 = vmatpush1.msra.mxu0 %v594
    %615 = vmatprep.subr.mxu0 0.0
    %616 = vmatpush1.msra.mxu0 %v595
    %617 = vmatprep.subr.mxu0 0.0
    %618 = vmatpush1.msra.mxu0 %v596
    %619 = vmatprep.subr.mxu0 0.0
    %620 = vmatpush1.msra.mxu0 %v597
    %621 = vmatprep.subr.mxu0 0.0
    %622 = vmatpush1.msra.mxu0 %v598
    %623 = vmatprep.subr.mxu0 0.0
    %624 = vmatpush1.msra.mxu0 %v599
    %625 = vmatprep.subr.mxu0 0.0
    %626 = vmatpush1.msra.mxu0 %v600
    %627 = vmatprep.subr.mxu0 0.0
    %628 = vmatpush1.msra.mxu0 %v601
    %629 = vmatprep.subr.mxu0 0.0
    %630 = vmatpush1.msra.mxu0 %v602
    %631 = vmatprep.subr.mxu0 0.0
    %632 = vmatpush1.msra.mxu0 %v603
    %633 = vmatprep.subr.mxu0 0.0
    %634 = vmatpush1.msra.mxu0 %v604
    %635 = vmatprep.subr.mxu0 0.0
    %636 = vmatpush1.msra.mxu0 %v605
    %637 = vmatprep.subr.mxu0 0.0
    %638 = vmatpush1.msra.mxu0 %v606
    %639 = vmatprep.subr.mxu0 0.0
    %640 = vmatpush1.msra.mxu0 %v607
    %641 = vmatprep.subr.mxu0 0.0
    %642 = vmatpush1.msra.mxu0 0.0
    %643 = vmatprep.subr.mxu0 0.0
    %644 = vmatpush1.msra.mxu0 0.0
    %645 = vmatprep.subr.mxu0 0.0
    %646 = vmatpush1.msra.mxu0 0.0
    %647 = vmatprep.subr.mxu0 0.0
    %648 = vmatpush1.msra.mxu0 0.0
    %649 = vmatprep.subr.mxu0 0.0
    %650 = vmatpush1.msra.mxu0 0.0
    %651 = vmatprep.subr.mxu0 0.0
    %652 = vmatpush1.msra.mxu0 0.0
    %653 = vmatprep.subr.mxu0 0.0
    %654 = vmatpush1.msra.mxu0 0.0
    %655 = vmatprep.subr.mxu0 0.0
    %656 = vmatpush1.msra.mxu0 0.0
    %657 = vmatprep.subr.mxu0 0.0
    %658 = vmatpush1.msra.mxu0 0.0
    %659 = vmatprep.subr.mxu0 0.0
    %660 = vmatpush1.msra.mxu0 0.0
    %661 = vmatprep.subr.mxu0 0.0
    %662 = vmatpush1.msra.mxu0 0.0
    %663 = vmatprep.subr.mxu0 0.0
    %664 = vmatpush1.msra.mxu0 0.0
    %665 = vmatprep.subr.mxu0 0.0
    %666 = vmatpush1.msra.mxu0 0.0
    %667 = vmatprep.subr.mxu0 0.0
    %668 = vmatpush1.msra.mxu0 0.0
    %669 = vmatprep.subr.mxu0 0.0
    %670 = vmatpush1.msra.mxu0 0.0
    %671 = vmatprep.subr.mxu0 0.0
    %672 = vmatpush1.msra.mxu0 0.0
    %673 = vmatprep.mubr.f32.mxu0 0.0
    %674 = vmatmul.mubr.f32.gmra.mrb[0].mxu0 %v591
    %v675 = vpop.f32.mrb[0].mxu0
    %v676 = vadd.f32 %v608, %v675
    %v677 = vpop.f32.mrb[0].mxu0
    %678 = vdwg.mxu0
    %v679 = vmax.f32 %v676, 0.0
    %v680 = vld [vmem:[#allocation8 + $0x2b0] sm:$0xff]
    %v681 = vld [vmem:[#allocation8 + $0x2c0] sm:$0xff]
    %v682 = vld [vmem:[#allocation7 + $0x14] ss:$0 sm:$0xff]
    %v684 = vsel %vm253, %v679, 0
    %686 = vmatprep.subr.mxu0 0.0
    %687 = vmatpush1.msra.mxu0 %v680
    %688 = vmatprep.subr.mxu0 0.0
    %689 = vmatpush1.msra.mxu0 %v681
    %690 = vmatprep.subr.mxu0 0.0
    %691 = vmatpush1.msra.mxu0 0.0
    %692 = vmatprep.subr.mxu0 0.0
    %693 = vmatpush1.msra.mxu0 0.0
    %694 = vmatprep.subr.mxu0 0.0
    %695 = vmatpush1.msra.mxu0 0.0
    %696 = vmatprep.subr.mxu0 0.0
    %697 = vmatpush1.msra.mxu0 0.0
    %698 = vmatprep.subr.mxu0 0.0
    %699 = vmatpush1.msra.mxu0 0.0
    %700 = vmatprep.subr.mxu0 0.0
    %701 = vmatpush1.msra.mxu0 0.0
    %702 = vmatprep.subr.mxu0 0.0
    %703 = vmatpush1.msra.mxu0 0.0
    %704 = vmatprep.subr.mxu0 0.0
    %705 = vmatpush1.msra.mxu0 0.0
    %706 = vmatprep.subr.mxu0 0.0
    %707 = vmatpush1.msra.mxu0 0.0
    %708 = vmatprep.subr.mxu0 0.0
    %709 = vmatpush1.msra.mxu0 0.0
    %710 = vmatprep.subr.mxu0 0.0
    %711 = vmatpush1.msra.mxu0 0.0
    %712 = vmatprep.subr.mxu0 0.0
    %713 = vmatpush1.msra.mxu0 0.0
    %714 = vmatprep.subr.mxu0 0.0
    %715 = vmatpush1.msra.mxu0 0.0
    %716 = vmatprep.subr.mxu0 0.0
    %717 = vmatpush1.msra.mxu0 0.0
    %718 = vmatprep.subr.mxu0 0.0
    %719 = vmatpush1.msra.mxu0 0.0
    %720 = vmatprep.subr.mxu0 0.0
    %721 = vmatpush1.msra.mxu0 0.0
    %722 = vmatprep.subr.mxu0 0.0
    %723 = vmatpush1.msra.mxu0 0.0
    %724 = vmatprep.subr.mxu0 0.0
    %725 = vmatpush1.msra.mxu0 0.0
    %726 = vmatprep.subr.mxu0 0.0
    %727 = vmatpush1.msra.mxu0 0.0
    %728 = vmatprep.subr.mxu0 0.0
    %729 = vmatpush1.msra.mxu0 0.0
    %730 = vmatprep.subr.mxu0 0.0
    %731 = vmatpush1.msra.mxu0 0.0
    %732 = vmatprep.subr.mxu0 0.0
    %733 = vmatpush1.msra.mxu0 0.0
    %734 = vmatprep.subr.mxu0 0.0
    %735 = vmatpush1.msra.mxu0 0.0
    %736 = vmatprep.subr.mxu0 0.0
    %737 = vmatpush1.msra.mxu0 0.0
    %738 = vmatprep.subr.mxu0 0.0
    %739 = vmatpush1.msra.mxu0 0.0
    %740 = vmatprep.subr.mxu0 0.0
    %741 = vmatpush1.msra.mxu0 0.0
    %742 = vmatprep.subr.mxu0 0.0
    %743 = vmatpush1.msra.mxu0 0.0
    %744 = vmatprep.subr.mxu0 0.0
    %745 = vmatpush1.msra.mxu0 0.0
    %746 = vmatprep.subr.mxu0 0.0
    %747 = vmatpush1.msra.mxu0 0.0
    %748 = vmatprep.subr.mxu0 0.0
    %749 = vmatpush1.msra.mxu0 0.0
    %750 = vmatprep.mubr.f32.mxu0 0.0
    %751 = vmatmul.mubr.f32.gmra.mrb[0].mxu0 %v684
    %v752 = vpop.f32.mrb[0].mxu0
    %v753 = vadd.f32 %v682, %v752
    %v754 = vpop.f32.mrb[0].mxu0
    %755 = vdwg.mxu0
    %v756 = vsel %vm253, %v753, 0.0
    %v757 = vrot.slane %v756, 4
    %v758 = vadd.f32 %v756, %v757
    %v759 = vrot.slane %v758, 2
    %v760 = vadd.f32 %v758, %v759
    %v761 = vrot.slane %v760, 1
    %v762 = vadd.f32 %v760, %v761
    %v763 = vmul.f32 %v762, 0.125
    %v764 = vsub.f32 %v753, %v763
    %v765 = vmul.f32 %v764, %v764
    %v766 = vsel %vm253, %v765, 0.0
    %v767 = vrot.slane %v766, 4
    %v768 = vadd.f32 %v766, %v767
    %v769 = vrot.slane %v768, 2
    %v770 = vadd.f32 %v768, %v769
    %v771 = vrot.slane %v770, 1
    %v772 = vadd.f32 %v770, %v771
    %v773 = vmul.f32 %v772, 0.125
    %v774 = vld [vmem:[#allocation7 + $0x15] ss:$0 sm:$0xff]
    %v775 = vadd.f32 %v773, 1e-05
    %v776 = vrsqrt.pop %v775
    %v777 = vmul.f32 %v774, %v776
    %v778 = vmul.f32 %v764, %v777
    %v779 = vld [vmem:[#allocation7 + $0x16] ss:$0 sm:$0xff]
    %v780 = vadd.f32 %v778, %v779
    %v781 = vmax.f32 %v780, 0.0
    %v782 = vld [vmem:[#allocation8 + $0x2d0] sm:$0xff]
    %v783 = vld [vmem:[#allocation8 + $0x2e0] sm:$0xff]
    %v784 = vld [vmem:[#allocation7 + $0x17] ss:$0 sm:$0xff]
    %v786 = vsel %vm253, %v781, 0
    %788 = vmatprep.subr.mxu0 0.0
    %789 = vmatpush1.msra.mxu0 %v782
    %790 = vmatprep.subr.mxu0 0.0
    %791 = vmatpush1.msra.mxu0 %v783
    %792 = vmatprep.subr.mxu0 0.0
    %793 = vmatpush1.msra.mxu0 0.0
    %794 = vmatprep.subr.mxu0 0.0
    %795 = vmatpush1.msra.mxu0 0.0
    %796 = vmatprep.subr.mxu0 0.0
    %797 = vmatpush1.msra.mxu0 0.0
    %798 = vmatprep.subr.mxu0 0.0
    %799 = vmatpush1.msra.mxu0 0.0
    %800 = vmatprep.subr.mxu0 0.0
    %801 = vmatpush1.msra.mxu0 0.0
    %802 = vmatprep.subr.mxu0 0.0
    %803 = vmatpush1.msra.mxu0 0.0
    %804 = vmatprep.subr.mxu0 0.0
    %805 = vmatpush1.msra.mxu0 0.0
    %806 = vmatprep.subr.mxu0 0.0
    %807 = vmatpush1.msra.mxu0 0.0
    %808 = vmatprep.subr.mxu0 0.0
    %809 = vmatpush1.msra.mxu0 0.0
    %810 = vmatprep.subr.mxu0 0.0
    %811 = vmatpush1.msra.mxu0 0.0
    %812 = vmatprep.subr.mxu0 0.0
    %813 = vmatpush1.msra.mxu0 0.0
    %814 = vmatprep.subr.mxu0 0.0
    %815 = vmatpush1.msra.mxu0 0.0
    %816 = vmatprep.subr.mxu0 0.0
    %817 = vmatpush1.msra.mxu0 0.0
    %818 = vmatprep.subr.mxu0 0.0
    %819 = vmatpush1.msra.mxu0 0.0
    %820 = vmatprep.subr.mxu0 0.0
    %821 = vmatpush1.msra.mxu0 0.0
    %822 = vmatprep.subr.mxu0 0.0
    %823 = vmatpush1.msra.mxu0 0.0
    %824 = vmatprep.subr.mxu0 0.0
    %825 = vmatpush1.msra.mxu0 0.0
    %826 = vmatprep.subr.mxu0 0.0
    %827 = vmatpush1.msra.mxu0 0.0
    %828 = vmatprep.subr.mxu0 0.0
    %829 = vmatpush1.msra.mxu0 0.0
    %830 = vmatprep.subr.mxu0 0.0
    %831 = vmatpush1.msra.mxu0 0.0
    %832 = vmatprep.subr.mxu0 0.0
    %833 = vmatpush1.msra.mxu0 0.0
    %834 = vmatprep.subr.mxu0 0.0
    %835 = vmatpush1.msra.mxu0 0.0
    %836 = vmatprep.subr.mxu0 0.0
    %837 = vmatpush1.msra.mxu0 0.0
    %838 = vmatprep.subr.mxu0 0.0
    %839 = vmatpush1.msra.mxu0 0.0
    %840 = vmatprep.subr.mxu0 0.0
    %841 = vmatpush1.msra.mxu0 0.0
    %842 = vmatprep.subr.mxu0 0.0
    %843 = vmatpush1.msra.mxu0 0.0
    %844 = vmatprep.subr.mxu0 0.0
    %845 = vmatpush1.msra.mxu0 0.0
    %846 = vmatprep.subr.mxu0 0.0
    %847 = vmatpush1.msra.mxu0 0.0
    %848 = vmatprep.subr.mxu0 0.0
    %849 = vmatpush1.msra.mxu0 0.0
    %850 = vmatprep.subr.mxu0 0.0
    %851 = vmatpush1.msra.mxu0 0.0
    %852 = vmatprep.mubr.f32.mxu0 0.0
    %853 = vmatmul.mubr.f32.gmra.mrb[0].mxu0 %v786
    %v854 = vpop.f32.mrb[0].mxu0
    %v855 = vadd.f32 %v784, %v854
    %v856 = vpop.f32.mrb[0].mxu0
    %857 = vdwg.mxu0
    %v858 = vsel %vm75, %v855, 0.0
    %v859 = vrot.slane %v858, 4
    %v860 = vadd.f32 %v858, %v859
    %v861 = vrot.slane %v860, 2
    %v862 = vadd.f32 %v860, %v861
    %v863 = vrot.slane %v862, 1
    %v864 = vadd.f32 %v862, %v863
    %v865 = vmul.f32 %v864, 0.125
    %v866 = vsub.f32 %v855, %v865
    %v867 = vmul.f32 %v866, %v866
    %v868 = vsel %vm75, %v867, 0.0
    %v869 = vrot.slane %v868, 4
    %v870 = vadd.f32 %v868, %v869
    %v871 = vrot.slane %v870, 2
    %v872 = vadd.f32 %v870, %v871
    %v873 = vrot.slane %v872, 1
    %v874 = vadd.f32 %v872, %v873
    %v875 = vmul.f32 %v874, 0.125
    %v876 = vld [vmem:[#allocation7 + $0x20] ss:$0 sm:$0xff]
    %v877 = vadd.f32 %v875, 1e-05
    %v878 = vrsqrt.pop %v877
    %v879 = vmul.f32 %v876, %v878
    %v880 = vmul.f32 %v866, %v879
    %v881 = vld [vmem:[#allocation7 + $0x21] ss:$0 sm:$0xff]
    %v882 = vadd.f32 %v880, %v881
    %v883 = vmax.f32 %v882, 0.0
    %v884 = vld [vmem:[#allocation8 + $0x2f0] sm:$0xff]
    %v885 = vld [vmem:[#allocation8 + $0x300] sm:$0xff]
    %v886 = vld [vmem:[#allocation8 + $0x310] sm:$0xff]
    %v887 = vld [vmem:[#allocation8 + $0x320] sm:$0xff]
    %v888 = vld [vmem:[#allocation7 + $0x22] ss:$0 sm:$0xff]
    %v890 = vsel %vm75, %v883, 0
    %892 = vmatprep.subr.mxu0 0.0
    %893 = vmatpush1.msra.mxu0 %v884
    %894 = vmatprep.subr.mxu0 0.0
    %895 = vmatpush1.msra.mxu0 %v885
    %896 = vmatprep.subr.mxu0 0.0
    %897 = vmatpush1.msra.mxu0 %v886
    %898 = vmatprep.subr.mxu0 0.0
    %899 = vmatpush1.msra.mxu0 %v887
    %900 = vmatprep.subr.mxu0 0.0
    %901 = vmatpush1.msra.mxu0 0.0
    %902 = vmatprep.subr.mxu0 0.0
    %903 = vmatpush1.msra.mxu0 0.0
    %904 = vmatprep.subr.mxu0 0.0
    %905 = vmatpush1.msra.mxu0 0.0
    %906 = vmatprep.subr.mxu0 0.0
    %907 = vmatpush1.msra.mxu0 0.0
    %908 = vmatprep.subr.mxu0 0.0
    %909 = vmatpush1.msra.mxu0 0.0
    %910 = vmatprep.subr.mxu0 0.0
    %911 = vmatpush1.msra.mxu0 0.0
    %912 = vmatprep.subr.mxu0 0.0
    %913 = vmatpush1.msra.mxu0 0.0
    %914 = vmatprep.subr.mxu0 0.0
    %915 = vmatpush1.msra.mxu0 0.0
    %916 = vmatprep.subr.mxu0 0.0
    %917 = vmatpush1.msra.mxu0 0.0
    %918 = vmatprep.subr.mxu0 0.0
    %919 = vmatpush1.msra.mxu0 0.0
    %920 = vmatprep.subr.mxu0 0.0
    %921 = vmatpush1.msra.mxu0 0.0
    %922 = vmatprep.subr.mxu0 0.0
    %923 = vmatpush1.msra.mxu0 0.0
    %924 = vmatprep.subr.mxu0 0.0
    %925 = vmatpush1.msra.mxu0 0.0
    %926 = vmatprep.subr.mxu0 0.0
    %927 = vmatpush1.msra.mxu0 0.0
    %928 = vmatprep.subr.mxu0 0.0
    %929 = vmatpush1.msra.mxu0 0.0
    %930 = vmatprep.subr.mxu0 0.0
    %931 = vmatpush1.msra.mxu0 0.0
    %932 = vmatprep.subr.mxu0 0.0
    %933 = vmatpush1.msra.mxu0 0.0
    %934 = vmatprep.subr.mxu0 0.0
    %935 = vmatpush1.msra.mxu0 0.0
    %936 = vmatprep.subr.mxu0 0.0
    %937 = vmatpush1.msra.mxu0 0.0
    %938 = vmatprep.subr.mxu0 0.0
    %939 = vmatpush1.msra.mxu0 0.0
    %940 = vmatprep.subr.mxu0 0.0
    %941 = vmatpush1.msra.mxu0 0.0
    %942 = vmatprep.subr.mxu0 0.0
    %943 = vmatpush1.msra.mxu0 0.0
    %944 = vmatprep.subr.mxu0 0.0
    %945 = vmatpush1.msra.mxu0 0.0
    %946 = vmatprep.subr.mxu0 0.0
    %947 = vmatpush1.msra.mxu0 0.0
    %948 = vmatprep.subr.mxu0 0.0
    %949 = vmatpush1.msra.mxu0 0.0
    %950 = vmatprep.subr.mxu0 0.0
    %951 = vmatpush1.msra.mxu0 0.0
    %952 = vmatprep.subr.mxu0 0.0
    %953 = vmatpush1.msra.mxu0 0.0
    %954 = vmatprep.subr.mxu0 0.0
    %955 = vmatpush1.msra.mxu0 0.0
    %956 = vmatprep.mubr.f32.mxu0 0.0
    %957 = vmatmul.mubr.f32.gmra.mrb[0].mxu0 %v890
    %v958 = vpop.f32.mrb[0].mxu0
    %v959 = vadd.f32 %v888, %v958
    %v960 = vpop.f32.mrb[0].mxu0
    %961 = vdwg.mxu0
    %962 = vst [vmem:[#allocation10] sm:$0xff] %v959
    %963 = vst [vmem:[#allocation10 + $0x8] sm:$0xff] %v474
    %964 = vst [vmem:[#allocation10 + $0x10] sm:$0xff] %v492
    // Predicated region
    $region34: #{tpu_custom_call.1} parent=1 // pred_check
      _
    $region35: #{tpu_custom_call.1} parent=1 // pred_check_branch
      %966 = sbr.rel (0) target = $region37
    $region36: #{tpu_custom_call.1} parent=1 // pred_region
      %s968 = ssub.s32 384, 384
      %969 = vsyncadd [#allocation4], %s968
      %s971 = sshll.u32 [#allocation10], 4
      %s972 = int_to_ptr.vmem [resolvable:$true] %s971
      %974 = dma.vmem_to_hbm [thread:$0]  %s972, 384, %s4, [#allocation4]
    $region37: #{tpu_custom_call.1} parent=1 // pred_fallthru
      _
    // Predicated region
    $region38: #{tpu_custom_call.1} parent=1 // pred_check
      _
    $region39: #{tpu_custom_call.1} parent=1 // pred_check_branch
      %976 = sbr.rel (0) target = $region41
    $region40: #{tpu_custom_call.1} parent=1 // pred_region
      %977 = dma.done [#allocation4], 384
    $region41: #{tpu_custom_call.1} parent=1 // pred_fallthru
      _
    %978 = vsyncpa [#allocation3], 1
    %979 = vsyncpa [#allocation6], 1
    %980 = vsyncpa [#allocation9], 1
    %981 = vsyncpa [#allocation4], 1

</llo_original>
